<compile_context>
chip_gen: v7x
topology: tpu7x:2x2x1
jax: 0.10.0
libtpu: 0.0.40
codegen_flags: <defaults>
</compile_context>

<pallas_src>
import functools

import jax
import jax.numpy as jnp
from jax.experimental import pallas as pl
from jax.experimental.pallas import tpu as pltpu


def _cdiv(a, b):
    return -(-a // b)


def _round_up(x, m):
    return ((x + m - 1) // m) * m


def _tensorcores_per_chip():
    """2 TensorCores per chip on v7x, 1 on v5e/v6e (and on CPU/interpret)."""
    try:
        kind = jax.devices()[0].device_kind.lower()
    except Exception:
        return 1
    return 2 if ("v7" in kind or "tpu7" in kind) else 1


# ----------------------------- Pallas kernel --------------------------------
def actor_mlp_kernel(x_ref, avail_ref,
                     w1_ref, b1_ref, w2_ref, b2_ref, w3_ref, b3_ref,
                     out_ref, *, use_relu: bool):
    """One batch tile of the full Actor_MLP forward (3 matmuls + mask + softmax)."""
    act = (lambda v: jnp.maximum(v, 0.0)) if use_relu else jnp.tanh
    cdt = w1_ref.dtype  # MXU compute dtype (bf16 default; f32 optional)

    x = x_ref[...].astype(cdt)                                          # (TB, D_in)

    h = jnp.dot(x, w1_ref[...], preferred_element_type=jnp.float32) + b1_ref[...]
    h = act(h)                                                          # (TB, H) f32

    h = jnp.dot(h.astype(cdt), w2_ref[...],
                preferred_element_type=jnp.float32) + b2_ref[...]
    h = act(h)                                                          # (TB, H) f32

    logits = jnp.dot(h.astype(cdt), w3_ref[...],
                     preferred_element_type=jnp.float32) + b3_ref[...]  # (TB, A)

    # x[avail == 0] = -1e10   (works for f32 / int8 / bool avail masks)
    logits = jnp.where(avail_ref[...] == 0, jnp.float32(-1e10), logits)

    # row-local softmax; exact division so rows sum to 1 to f32 rounding
    m = jnp.max(logits, axis=-1, keepdims=True)
    e = jnp.exp(logits - m)
    s = jnp.sum(e, axis=-1, keepdims=True)
    out_ref[...] = (e / s).astype(out_ref.dtype)


# ----------------------------- wrapper ---------------------------------------
def actor_mlp_forward(actor_input, avail_a_n, params, *, use_relu=False,
                      tb=1024, compute_dtype=jnp.bfloat16):
    """actor_input: (B, D_in) f32; avail_a_n: (B, A) in {0,1} (f32/int8/bool)."""
    B, D_in = actor_input.shape
    A = avail_a_n.shape[-1]
    w1, b1, w2, b2, w3, b3 = params
    H = w1.shape[1]

    # bf16 weights cut MXU push count ~3x vs f32 multi-pass and halve weight DMA.
    # Accumulation / bias / mask / softmax stay f32 in-kernel.
    w1 = w1.astype(compute_dtype)
    w2 = w2.astype(compute_dtype)
    w3 = w3.astype(compute_dtype)

    # ---- batch tile: big tiles amortize the ~0.35us/step overhead; working
    # set is tiny so VMEM is never the limit (well under default scoped VMEM).
    tb_eff = int(min(max(tb, 8), 2048))
    tb_eff = min(tb_eff, _round_up(B, 8))
    tb_eff = _round_up(tb_eff, 8)

    # v7x only: the "parallel" grid axis is sharded across 2 TensorCores; keep
    # the step count a multiple of 2 so both get equal work.  Single-core
    # chips (v5e / v6e) keep one big step — no forced split.
    n_cores = _tensorcores_per_chip()
    if n_cores > 1 and B > 8 * n_cores:
        steps = n_cores * max(1, _cdiv(B, n_cores * tb_eff))
        tb_eff = _round_up(_cdiv(B, steps), 8)

    grid = (_cdiv(B, tb_eff),)      # ragged last block: OOB rows discarded on write
    tile = lambda i: (i, 0)         # batch-tiled arrays
    full = lambda i: (0, 0)         # constant-index blocks: Mosaic elides re-DMA

    kernel = functools.partial(actor_mlp_kernel, use_relu=use_relu)

    return pl.pallas_call(
        kernel,
        out_shape=jax.ShapeDtypeStruct((B, A), jnp.float32),
        grid_spec=pltpu.PrefetchScalarGridSpec(
            num_scalar_prefetch=0,
            grid=grid,
            in_specs=[
                pl.BlockSpec((tb_eff, D_in), tile),   # actor_input
                pl.BlockSpec((tb_eff, A), tile),      # avail_a_n (last dim = full A)
                pl.BlockSpec((D_in, H), full),        # W1 (in, out)
                pl.BlockSpec((1, H), full),           # b1
                pl.BlockSpec((H, H), full),           # W2
                pl.BlockSpec((1, H), full),           # b2
                pl.BlockSpec((H, A), full),           # W3
                pl.BlockSpec((1, A), full),           # b3
            ],
            out_specs=pl.BlockSpec((tb_eff, A), tile),
        ),
        compiler_params=pltpu.CompilerParams(
            dimension_semantics=("parallel",),
        ),
    )(actor_input, avail_a_n, w1, b1, w2, b2, w3, b3)


# ----------------------------- param init ------------------------------------
def init_params(key, actor_input_dim, hidden_dim, action_dim):
    """Orthogonal weights (gain 1.0, 1.0, 0.01), zero biases — like orthogonal_init."""
    k1, k2, k3 = jax.random.split(key, 3)
    ortho = jax.nn.initializers.orthogonal
    # PyTorch Linear weight is (out, in); init that shape then transpose to (in, out).
    w1 = ortho(scale=1.0)(k1, (hidden_dim, actor_input_dim), jnp.float32).T
    w2 = ortho(scale=1.0)(k2, (hidden_dim, hidden_dim), jnp.float32).T
    w3 = ortho(scale=0.01)(k3, (action_dim, hidden_dim), jnp.float32).T
    b1 = jnp.zeros((1, hidden_dim), jnp.float32)
    b2 = jnp.zeros((1, hidden_dim), jnp.float32)
    b3 = jnp.zeros((1, action_dim), jnp.float32)
    return (w1, b1, w2, b2, w3, b3)


# ----------------------------- reference (pure JAX) ---------------------------
def actor_mlp_ref(actor_input, avail_a_n, params, *, use_relu=False):
    w1, b1, w2, b2, w3, b3 = params
    act = jax.nn.relu if use_relu else jnp.tanh
    x = act(actor_input @ w1 + b1)
    x = act(x @ w2 + b2)
    x = x @ w3 + b3
    x = jnp.where(avail_a_n == 0, -1e10, x)
    return jax.nn.softmax(x, axis=-1)


# ----------------------------- main -------------------------------------------
if __name__ == "__main__":
    D_IN, H, A = 32, 32, 16
    USE_RELU = False                       # args.use_relu = 0 -> Tanh

    root = jax.random.PRNGKey(0)
    k_params, k_c1, k_c2, k_c3 = jax.random.split(root, 4)
    params = init_params(k_params, D_IN, H, A)

    def make_inputs(k, b):
        k_in, k_avail = jax.random.split(k)
        x = jax.random.normal(k_in, (b, D_IN), jnp.float32)
        avail = (jax.random.uniform(k_avail, (b, A)) > 0.3).astype(jnp.float32)
        avail = avail.at[:, 0].set(1.0)    # at least one available action per row
        return x, avail

    # case 1: single grid step; case 2: ragged batch (2 even steps on v7x,
    # 1 ragged step on v5e/v6e); case 3: small tile forcing multi-step + ragged tail.
    cases = [(k_c1, 8, 1024), (k_c2, 50, 1024), (k_c3, 50, 16)]

    for case_key, B, tb in cases:
        actor_input, avail_a_n = make_inputs(case_key, B)
        ref = actor_mlp_ref(actor_input, avail_a_n, params, use_relu=USE_RELU)

        for cdt, tol in ((jnp.float32, 2e-3), (jnp.bfloat16, 1e-2)):
            prob = actor_mlp_forward(actor_input, avail_a_n, params,
                                     use_relu=USE_RELU, tb=tb, compute_dtype=cdt)
            prob = jax.block_until_ready(prob)

            assert prob.shape == (B, A)
            assert jnp.allclose(prob, ref, atol=tol, rtol=tol), \
                f"mismatch vs reference (B={B}, tb={tb}, dtype={cdt})"
            assert jnp.allclose(jnp.sum(prob, axis=-1), 1.0, atol=1e-4)
            assert bool(jnp.all(jnp.where(avail_a_n == 0, prob, 0.0) < 1e-6))

    print("KERNEL_OK")
</pallas_src>

<mosaic_0001>
module attributes {stable_mosaic.version = 11 : i64} {
  func.func @actor_mlp_kernel(%arg0: i32, %arg1: memref<8x32xf32, #tpu.memory_space<vmem>>, %arg2: memref<8x16xf32, #tpu.memory_space<vmem>>, %arg3: memref<32x32xf32, #tpu.memory_space<vmem>>, %arg4: memref<1x32xf32, #tpu.memory_space<vmem>>, %arg5: memref<32x32xf32, #tpu.memory_space<vmem>>, %arg6: memref<1x32xf32, #tpu.memory_space<vmem>>, %arg7: memref<32x16xf32, #tpu.memory_space<vmem>>, %arg8: memref<1x16xf32, #tpu.memory_space<vmem>>, %arg9: memref<8x16xf32, #tpu.memory_space<vmem>>) attributes {dimension_semantics = [#tpu.dimension_semantics<parallel>], iteration_bounds = array<i64: 1>, scalar_prefetch = 0 : i64, scratch_operands = 0 : i64, tpu.core_type = #tpu.core_type<tc>, window_params = [{transform_indices = @transform_0, window_bounds = array<i64: 8, 32>}, {transform_indices = @transform_1, window_bounds = array<i64: 8, 16>}, {pipeline_mode = #tpu.pipeline_mode<synchronous>, transform_indices = @transform_2, window_bounds = array<i64: 32, 32>}, {pipeline_mode = #tpu.pipeline_mode<synchronous>, transform_indices = @transform_3, window_bounds = array<i64: 1, 32>}, {pipeline_mode = #tpu.pipeline_mode<synchronous>, transform_indices = @transform_4, window_bounds = array<i64: 32, 32>}, {pipeline_mode = #tpu.pipeline_mode<synchronous>, transform_indices = @transform_5, window_bounds = array<i64: 1, 32>}, {pipeline_mode = #tpu.pipeline_mode<synchronous>, transform_indices = @transform_6, window_bounds = array<i64: 32, 16>}, {pipeline_mode = #tpu.pipeline_mode<synchronous>, transform_indices = @transform_7, window_bounds = array<i64: 1, 16>}, {transform_indices = @transform_8, window_bounds = array<i64: 8, 16>}]} {
    %c0 = arith.constant 0 : index
    %c0_0 = arith.constant 0 : index
    %0 = vector.load %arg1[%c0, %c0_0] : memref<8x32xf32, #tpu.memory_space<vmem>>, vector<8x32xf32>
    %c0_1 = arith.constant 0 : index
    %c0_2 = arith.constant 0 : index
    %1 = vector.load %arg3[%c0_1, %c0_2] : memref<32x32xf32, #tpu.memory_space<vmem>>, vector<32x32xf32>
    %cst = arith.constant dense<0.000000e+00> : vector<8x32xf32>
    %2 = tpu.matmul %0, %1, %cst {dimension_numbers = #tpu.dot_dimension_numbers<[1], [0], [0], [1], [0, 0, 1, 1], [], []>} : vector<8x32xf32>, vector<32x32xf32>, vector<8x32xf32> -> vector<8x32xf32>
    %c0_3 = arith.constant 0 : index
    %c0_4 = arith.constant 0 : index
    %3 = vector.load %arg4[%c0_3, %c0_4] : memref<1x32xf32, #tpu.memory_space<vmem>>, vector<1x32xf32>
    %4 = vector.broadcast %3 : vector<1x32xf32> to vector<8x32xf32>
    %5 = arith.addf %2, %4 : vector<8x32xf32>
    %6 = math.tanh %5 : vector<8x32xf32>
    %c0_5 = arith.constant 0 : index
    %c0_6 = arith.constant 0 : index
    %7 = vector.load %arg5[%c0_5, %c0_6] : memref<32x32xf32, #tpu.memory_space<vmem>>, vector<32x32xf32>
    %cst_7 = arith.constant dense<0.000000e+00> : vector<8x32xf32>
    %8 = tpu.matmul %6, %7, %cst_7 {dimension_numbers = #tpu.dot_dimension_numbers<[1], [0], [0], [1], [0, 0, 1, 1], [], []>} : vector<8x32xf32>, vector<32x32xf32>, vector<8x32xf32> -> vector<8x32xf32>
    %c0_8 = arith.constant 0 : index
    %c0_9 = arith.constant 0 : index
    %9 = vector.load %arg6[%c0_8, %c0_9] : memref<1x32xf32, #tpu.memory_space<vmem>>, vector<1x32xf32>
    %10 = vector.broadcast %9 : vector<1x32xf32> to vector<8x32xf32>
    %11 = arith.addf %8, %10 : vector<8x32xf32>
    %12 = math.tanh %11 : vector<8x32xf32>
    %c0_10 = arith.constant 0 : index
    %c0_11 = arith.constant 0 : index
    %13 = vector.load %arg7[%c0_10, %c0_11] : memref<32x16xf32, #tpu.memory_space<vmem>>, vector<32x16xf32>
    %cst_12 = arith.constant dense<0.000000e+00> : vector<8x16xf32>
    %14 = tpu.matmul %12, %13, %cst_12 {dimension_numbers = #tpu.dot_dimension_numbers<[1], [0], [0], [1], [0, 0, 1, 1], [], []>} : vector<8x32xf32>, vector<32x16xf32>, vector<8x16xf32> -> vector<8x16xf32>
    %c0_13 = arith.constant 0 : index
    %c0_14 = arith.constant 0 : index
    %15 = vector.load %arg8[%c0_13, %c0_14] : memref<1x16xf32, #tpu.memory_space<vmem>>, vector<1x16xf32>
    %16 = vector.broadcast %15 : vector<1x16xf32> to vector<8x16xf32>
    %17 = arith.addf %14, %16 : vector<8x16xf32>
    %c0_15 = arith.constant 0 : index
    %c0_16 = arith.constant 0 : index
    %18 = vector.load %arg2[%c0_15, %c0_16] : memref<8x16xf32, #tpu.memory_space<vmem>>, vector<8x16xf32>
    %cst_17 = arith.constant 0.000000e+00 : f32
    %19 = vector.broadcast %cst_17 : f32 to vector<8x16xf32>
    %20 = arith.cmpf oeq, %18, %19 : vector<8x16xf32>
    %cst_18 = arith.constant -1.000000e+10 : f32
    %21 = vector.broadcast %cst_18 : f32 to vector<8x16xf32>
    %22 = arith.select %20, %21, %17 : vector<8x16xi1>, vector<8x16xf32>
    %cst_19 = arith.constant dense<0xFF800000> : vector<8xf32>
    %23 = vector.multi_reduction <maximumf>, %22, %cst_19 [1] : vector<8x16xf32> to vector<8xf32>
    %24 = vector.shape_cast %23 : vector<8xf32> to vector<8x1xf32>
    %25 = vector.broadcast %24 : vector<8x1xf32> to vector<8x16xf32>
    %26 = arith.subf %22, %25 : vector<8x16xf32>
    %27 = math.exp %26 : vector<8x16xf32>
    %cst_20 = arith.constant dense<0.000000e+00> : vector<8xf32>
    %28 = vector.multi_reduction <add>, %27, %cst_20 [1] : vector<8x16xf32> to vector<8xf32>
    %29 = vector.shape_cast %28 : vector<8xf32> to vector<8x1xf32>
    %30 = vector.broadcast %29 : vector<8x1xf32> to vector<8x16xf32>
    %31 = arith.divf %27, %30 : vector<8x16xf32>
    %c0_21 = arith.constant 0 : index
    %c0_22 = arith.constant 0 : index
    %32 = vector.load %arg9[%c0_21, %c0_22] : memref<8x16xf32, #tpu.memory_space<vmem>>, vector<8x16xf32>
    tpu.vector_store %arg9[%c0_21, %c0_22], %31 {strides = array<i32>} : memref<8x16xf32, #tpu.memory_space<vmem>>, vector<8x16xf32>,
    return
  }
  func.func @transform_0(%arg0: i32) -> (i32, i32) {
    %c0_i32 = arith.constant 0 : i32
    %c0_i32_0 = arith.constant 0 : i32
    return %arg0, %c0_i32 : i32, i32
  }
  func.func @transform_1(%arg0: i32) -> (i32, i32) {
    %c0_i32 = arith.constant 0 : i32
    %c0_i32_0 = arith.constant 0 : i32
    return %arg0, %c0_i32 : i32, i32
  }
  func.func @transform_2(%arg0: i32) -> (i32, i32) {
    %c0_i32 = arith.constant 0 : i32
    %c0_i32_0 = arith.constant 0 : i32
    %c0_i32_1 = arith.constant 0 : i32
    return %c0_i32, %c0_i32_0 : i32, i32
  }
  func.func @transform_3(%arg0: i32) -> (i32, i32) {
    %c0_i32 = arith.constant 0 : i32
    %c0_i32_0 = arith.constant 0 : i32
    %c0_i32_1 = arith.constant 0 : i32
    return %c0_i32, %c0_i32_0 : i32, i32
  }
  func.func @transform_4(%arg0: i32) -> (i32, i32) {
    %c0_i32 = arith.constant 0 : i32
    %c0_i32_0 = arith.constant 0 : i32
    %c0_i32_1 = arith.constant 0 : i32
    return %c0_i32, %c0_i32_0 : i32, i32
  }
  func.func @transform_5(%arg0: i32) -> (i32, i32) {
    %c0_i32 = arith.constant 0 : i32
    %c0_i32_0 = arith.constant 0 : i32
    %c0_i32_1 = arith.constant 0 : i32
    return %c0_i32, %c0_i32_0 : i32, i32
  }
  func.func @transform_6(%arg0: i32) -> (i32, i32) {
    %c0_i32 = arith.constant 0 : i32
    %c0_i32_0 = arith.constant 0 : i32
    %c0_i32_1 = arith.constant 0 : i32
    return %c0_i32, %c0_i32_0 : i32, i32
  }
  func.func @transform_7(%arg0: i32) -> (i32, i32) {
    %c0_i32 = arith.constant 0 : i32
    %c0_i32_0 = arith.constant 0 : i32
    %c0_i32_1 = arith.constant 0 : i32
    return %c0_i32, %c0_i32_0 : i32, i32
  }
  func.func @transform_8(%arg0: i32) -> (i32, i32) {
    %c0_i32 = arith.constant 0 : i32
    %c0_i32_0 = arith.constant 0 : i32
    return %arg0, %c0_i32 : i32, i32
  }
}

</mosaic_0001>

<llo_original>
// kernel: tpu_custom_call.1
$region0: #{tpu_custom_call.1}
  #allocation0 [shape = 'u32[]', space=smem, size = 0x4, offset = 0x4, fixed_abs, tag = 'smem constant byte address 0x4 - core index']
  #allocation1 [shape = 'u32[144,128]{1,0:T(1,128)}', space=vmem, size = 0x12000, scoped, tag = 'internal scratch']
  %s0 = inlined_call_operand.vmem [shape: f32[8,32], index: 0, kind: input, shape index: {}]
  %s1 = inlined_call_operand.vmem [shape: f32[8,16], index: 1, kind: input, shape index: {}]
  %s2 = inlined_call_operand.vmem [shape: f32[32,32], index: 2, kind: input, shape index: {}]
  %s3 = inlined_call_operand.vmem [shape: f32[1,32], index: 3, kind: input, shape index: {}]
  %s4 = inlined_call_operand.hbm [shape: f32[32,32], index: 4, kind: input, shape index: {}]
  %s5 = inlined_call_operand.vmem [shape: f32[1,32], index: 5, kind: input, shape index: {}]
  %s6 = inlined_call_operand.vmem [shape: f32[32,16], index: 6, kind: input, shape index: {}]
  %s7 = inlined_call_operand.vmem [shape: f32[1,16], index: 7, kind: input, shape index: {}]
  %s8 = inlined_call_operand.hbm [shape: f32[8,16], index: 8, kind: output, shape index: {}]
  %s9 = sld [smem:[#allocation0]]
  $region46: #{tpu_custom_call.1} parent=0
    _
  %s11 = ssub.s32 1, %s9
  %s12 = scalar_select 0, %s11, %s9
  $region1: #{tpu_custom_call.1} parent=0
    #allocation2 [shape = 'u8[16384]{0}', space=vmem, size = 0x4000, scoped, tag = 'input window, operand 4, single buffered']
    #allocation3 [shape = 's32[1]{0}', space=sflag, size = 0x4, scoped, tag = 'scoped memory for tpu_custom_call.1']
    #allocation4 [shape = 's32[1]{0}', space=sflag, size = 0x4, scoped, tag = 'scoped memory for tpu_custom_call.1']
    #allocation5 [shape = 'u8[4096]{0}', space=vmem, size = 0x1000, scoped, tag = 'output window, operand 0, single buffered']
    %13 = vsyncpa [#allocation3], 0
    %14 = vsyncpa [#allocation4], 0
    // Predicated region
    $region2: #{tpu_custom_call.1} parent=1 // pred_check
      _
    $region3: #{tpu_custom_call.1} parent=1 // pred_check_branch
      %16 = sbr.rel (0) target = $region5
    $region4: #{tpu_custom_call.1} parent=1 // pred_region
      _
    $region5: #{tpu_custom_call.1} parent=1 // pred_fallthru
      _
    // Predicated region
    $region6: #{tpu_custom_call.1} parent=1 // pred_check
      _
    $region7: #{tpu_custom_call.1} parent=1 // pred_check_branch
      %18 = sbr.rel (0) target = $region9
    $region8: #{tpu_custom_call.1} parent=1 // pred_region
      _
    $region9: #{tpu_custom_call.1} parent=1 // pred_fallthru
      _
    // Predicated region
    $region10: #{tpu_custom_call.1} parent=1 // pred_check
      _
    $region11: #{tpu_custom_call.1} parent=1 // pred_check_branch
      %20 = sbr.rel (0) target = $region13
    $region12: #{tpu_custom_call.1} parent=1 // pred_region
      _
    $region13: #{tpu_custom_call.1} parent=1 // pred_fallthru
      _
    // Predicated region
    $region14: #{tpu_custom_call.1} parent=1 // pred_check
      _
    $region15: #{tpu_custom_call.1} parent=1 // pred_check_branch
      %22 = sbr.rel (0) target = $region17
    $region16: #{tpu_custom_call.1} parent=1 // pred_region
      _
    $region17: #{tpu_custom_call.1} parent=1 // pred_fallthru
      _
    // Predicated region
    $region18: #{tpu_custom_call.1} parent=1 // pred_check
      _
    $region19: #{tpu_custom_call.1} parent=1 // pred_check_branch
      %24 = sbr.rel (0) target = $region21
    $region20: #{tpu_custom_call.1} parent=1 // pred_region
      %s26 = ssub.s32 512, 512
      %27 = vsyncadd [#allocation3], %s26
      %s28 = sshll.u32 [#allocation2], 4
      %s29 = int_to_ptr.vmem [resolvable:$true] %s28
      %34 = dma.hbm_to_vmem [thread:$0]  %s4, 512, %s29, [#allocation3], 128, 128, 8
    $region21: #{tpu_custom_call.1} parent=1 // pred_fallthru
      _
    // Predicated region
    $region22: #{tpu_custom_call.1} parent=1 // pred_check
      _
    $region23: #{tpu_custom_call.1} parent=1 // pred_check_branch
      %36 = sbr.rel (0) target = $region25
    $region24: #{tpu_custom_call.1} parent=1 // pred_region
      _
    $region25: #{tpu_custom_call.1} parent=1 // pred_fallthru
      _
    // Predicated region
    $region26: #{tpu_custom_call.1} parent=1 // pred_check
      _
    $region27: #{tpu_custom_call.1} parent=1 // pred_check_branch
      %38 = sbr.rel (0) target = $region29
    $region28: #{tpu_custom_call.1} parent=1 // pred_region
      _
    $region29: #{tpu_custom_call.1} parent=1 // pred_fallthru
      _
    // Predicated region
    $region30: #{tpu_custom_call.1} parent=1 // pred_check
      _
    $region31: #{tpu_custom_call.1} parent=1 // pred_check_branch
      %40 = sbr.rel (0) target = $region33
    $region32: #{tpu_custom_call.1} parent=1 // pred_region
      _
    $region33: #{tpu_custom_call.1} parent=1 // pred_fallthru
      _
    // Predicated region
    $region34: #{tpu_custom_call.1} parent=1 // pred_check
      _
    $region35: #{tpu_custom_call.1} parent=1 // pred_check_branch
      %42 = sbr.rel (0) target = $region37
    $region36: #{tpu_custom_call.1} parent=1 // pred_region
      %43 = dma.done [#allocation3], 512
    $region37: #{tpu_custom_call.1} parent=1 // pred_fallthru
      _
    %v44 = vld [vmem:[%s0] sm:$0xff]
    %v45 = vld [vmem:[%s2] sm:$0xff]
    %v46 = vld [vmem:[%s2 + $0x8] sm:$0xff]
    %v47 = vld [vmem:[%s2 + $0x10] sm:$0xff]
    %v48 = vld [vmem:[%s2 + $0x18] sm:$0xff]
    %v49 = vld [vmem:[%s3] sm:$0x1]
    %v51 = vlaneseq
    %v52 = vshrl.u32 %v51, 7
    %v53 = vsub.s32 0, %v52
    %v54 = vrot.slane %v49, %v53
    %vm56 = vcmask 261120
    %v58 = vsel %vm56, %v44, 0
    %60 = vmatprep.subr.mxu0 0.0
    %61 = vmatpush1.msra.mxu0 %v45
    %62 = vmatprep.subr.mxu0 0.0
    %63 = vmatpush1.msra.mxu0 %v46
    %64 = vmatprep.subr.mxu0 0.0
    %65 = vmatpush1.msra.mxu0 %v47
    %66 = vmatprep.subr.mxu0 0.0
    %67 = vmatpush1.msra.mxu0 %v48
    %68 = vmatprep.subr.mxu0 0.0
    %69 = vmatpush1.msra.mxu0 0.0
    %70 = vmatprep.subr.mxu0 0.0
    %71 = vmatpush1.msra.mxu0 0.0
    %72 = vmatprep.subr.mxu0 0.0
    %73 = vmatpush1.msra.mxu0 0.0
    %74 = vmatprep.subr.mxu0 0.0
    %75 = vmatpush1.msra.mxu0 0.0
    %76 = vmatprep.subr.mxu0 0.0
    %77 = vmatpush1.msra.mxu0 0.0
    %78 = vmatprep.subr.mxu0 0.0
    %79 = vmatpush1.msra.mxu0 0.0
    %80 = vmatprep.subr.mxu0 0.0
    %81 = vmatpush1.msra.mxu0 0.0
    %82 = vmatprep.subr.mxu0 0.0
    %83 = vmatpush1.msra.mxu0 0.0
    %84 = vmatprep.subr.mxu0 0.0
    %85 = vmatpush1.msra.mxu0 0.0
    %86 = vmatprep.subr.mxu0 0.0
    %87 = vmatpush1.msra.mxu0 0.0
    %88 = vmatprep.subr.mxu0 0.0
    %89 = vmatpush1.msra.mxu0 0.0
    %90 = vmatprep.subr.mxu0 0.0
    %91 = vmatpush1.msra.mxu0 0.0
    %92 = vmatprep.subr.mxu0 0.0
    %93 = vmatpush1.msra.mxu0 0.0
    %94 = vmatprep.subr.mxu0 0.0
    %95 = vmatpush1.msra.mxu0 0.0
    %96 = vmatprep.subr.mxu0 0.0
    %97 = vmatpush1.msra.mxu0 0.0
    %98 = vmatprep.subr.mxu0 0.0
    %99 = vmatpush1.msra.mxu0 0.0
    %100 = vmatprep.subr.mxu0 0.0
    %101 = vmatpush1.msra.mxu0 0.0
    %102 = vmatprep.subr.mxu0 0.0
    %103 = vmatpush1.msra.mxu0 0.0
    %104 = vmatprep.subr.mxu0 0.0
    %105 = vmatpush1.msra.mxu0 0.0
    %106 = vmatprep.subr.mxu0 0.0
    %107 = vmatpush1.msra.mxu0 0.0
    %108 = vmatprep.subr.mxu0 0.0
    %109 = vmatpush1.msra.mxu0 0.0
    %110 = vmatprep.subr.mxu0 0.0
    %111 = vmatpush1.msra.mxu0 0.0
    %112 = vmatprep.subr.mxu0 0.0
    %113 = vmatpush1.msra.mxu0 0.0
    %114 = vmatprep.subr.mxu0 0.0
    %115 = vmatpush1.msra.mxu0 0.0
    %116 = vmatprep.subr.mxu0 0.0
    %117 = vmatpush1.msra.mxu0 0.0
    %118 = vmatprep.subr.mxu0 0.0
    %119 = vmatpush1.msra.mxu0 0.0
    %120 = vmatprep.subr.mxu0 0.0
    %121 = vmatpush1.msra.mxu0 0.0
    %122 = vmatprep.subr.mxu0 0.0
    %123 = vmatpush1.msra.mxu0 0.0
    %124 = vmatprep.mubr.f32.mxu0 0.0
    %125 = vmatmul.mubr.f32.gmra.mrb[0].mxu0 %v58
    %v126 = vpop.f32.mrb[0].mxu0
    %v127 = vadd.f32 %v54, %v126
    %v128 = vpop.f32.mrb[0].mxu0
    %129 = vdwg.mxu0
    %v130 = vtanh.pop %v127
    %v131 = vld [vmem:[#allocation2] sm:$0xff]
    %v132 = vld [vmem:[#allocation2 + $0x8] sm:$0xff]
    %v133 = vld [vmem:[#allocation2 + $0x10] sm:$0xff]
    %v134 = vld [vmem:[#allocation2 + $0x18] sm:$0xff]
    %v135 = vld [vmem:[%s5] sm:$0x1]
    %v137 = vlaneseq
    %v138 = vshrl.u32 %v137, 7
    %v139 = vsub.s32 0, %v138
    %v140 = vrot.slane %v135, %v139
    %v143 = vsel %vm56, %v130, 0
    %145 = vmatprep.subr.mxu0 0.0
    %146 = vmatpush1.msra.mxu0 %v131
    %147 = vmatprep.subr.mxu0 0.0
    %148 = vmatpush1.msra.mxu0 %v132
    %149 = vmatprep.subr.mxu0 0.0
    %150 = vmatpush1.msra.mxu0 %v133
    %151 = vmatprep.subr.mxu0 0.0
    %152 = vmatpush1.msra.mxu0 %v134
    %153 = vmatprep.subr.mxu0 0.0
    %154 = vmatpush1.msra.mxu0 0.0
    %155 = vmatprep.subr.mxu0 0.0
    %156 = vmatpush1.msra.mxu0 0.0
    %157 = vmatprep.subr.mxu0 0.0
    %158 = vmatpush1.msra.mxu0 0.0
    %159 = vmatprep.subr.mxu0 0.0
    %160 = vmatpush1.msra.mxu0 0.0
    %161 = vmatprep.subr.mxu0 0.0
    %162 = vmatpush1.msra.mxu0 0.0
    %163 = vmatprep.subr.mxu0 0.0
    %164 = vmatpush1.msra.mxu0 0.0
    %165 = vmatprep.subr.mxu0 0.0
    %166 = vmatpush1.msra.mxu0 0.0
    %167 = vmatprep.subr.mxu0 0.0
    %168 = vmatpush1.msra.mxu0 0.0
    %169 = vmatprep.subr.mxu0 0.0
    %170 = vmatpush1.msra.mxu0 0.0
    %171 = vmatprep.subr.mxu0 0.0
    %172 = vmatpush1.msra.mxu0 0.0
    %173 = vmatprep.subr.mxu0 0.0
    %174 = vmatpush1.msra.mxu0 0.0
    %175 = vmatprep.subr.mxu0 0.0
    %176 = vmatpush1.msra.mxu0 0.0
    %177 = vmatprep.subr.mxu0 0.0
    %178 = vmatpush1.msra.mxu0 0.0
    %179 = vmatprep.subr.mxu0 0.0
    %180 = vmatpush1.msra.mxu0 0.0
    %181 = vmatprep.subr.mxu0 0.0
    %182 = vmatpush1.msra.mxu0 0.0
    %183 = vmatprep.subr.mxu0 0.0
    %184 = vmatpush1.msra.mxu0 0.0
    %185 = vmatprep.subr.mxu0 0.0
    %186 = vmatpush1.msra.mxu0 0.0
    %187 = vmatprep.subr.mxu0 0.0
    %188 = vmatpush1.msra.mxu0 0.0
    %189 = vmatprep.subr.mxu0 0.0
    %190 = vmatpush1.msra.mxu0 0.0
    %191 = vmatprep.subr.mxu0 0.0
    %192 = vmatpush1.msra.mxu0 0.0
    %193 = vmatprep.subr.mxu0 0.0
    %194 = vmatpush1.msra.mxu0 0.0
    %195 = vmatprep.subr.mxu0 0.0
    %196 = vmatpush1.msra.mxu0 0.0
    %197 = vmatprep.subr.mxu0 0.0
    %198 = vmatpush1.msra.mxu0 0.0
    %199 = vmatprep.subr.mxu0 0.0
    %200 = vmatpush1.msra.mxu0 0.0
    %201 = vmatprep.subr.mxu0 0.0
    %202 = vmatpush1.msra.mxu0 0.0
    %203 = vmatprep.subr.mxu0 0.0
    %204 = vmatpush1.msra.mxu0 0.0
    %205 = vmatprep.subr.mxu0 0.0
    %206 = vmatpush1.msra.mxu0 0.0
    %207 = vmatprep.subr.mxu0 0.0
    %208 = vmatpush1.msra.mxu0 0.0
    %209 = vmatprep.mubr.f32.mxu0 0.0
    %210 = vmatmul.mubr.f32.gmra.mrb[0].mxu0 %v143
    %v211 = vpop.f32.mrb[0].mxu0
    %v212 = vadd.f32 %v140, %v211
    %v213 = vpop.f32.mrb[0].mxu0
    %214 = vdwg.mxu0
    %v215 = vtanh.pop %v212
    %v216 = vld [vmem:[%s6] sm:$0xff]
    %v217 = vld [vmem:[%s6 + $0x8] sm:$0xff]
    %v218 = vld [vmem:[%s6 + $0x10] sm:$0xff]
    %v219 = vld [vmem:[%s6 + $0x18] sm:$0xff]
    %v220 = vld [vmem:[%s7] sm:$0x1]
    %v222 = vlaneseq
    %v223 = vshrl.u32 %v222, 7
    %v224 = vsub.s32 0, %v223
    %v225 = vrot.slane %v220, %v224
    %v228 = vsel %vm56, %v215, 0
    %230 = vmatprep.subr.mxu0 0.0
    %231 = vmatpush1.msra.mxu0 %v216
    %232 = vmatprep.subr.mxu0 0.0
    %233 = vmatpush1.msra.mxu0 %v217
    %234 = vmatprep.subr.mxu0 0.0
    %235 = vmatpush1.msra.mxu0 %v218
    %236 = vmatprep.subr.mxu0 0.0
    %237 = vmatpush1.msra.mxu0 %v219
    %238 = vmatprep.subr.mxu0 0.0
    %239 = vmatpush1.msra.mxu0 0.0
    %240 = vmatprep.subr.mxu0 0.0
    %241 = vmatpush1.msra.mxu0 0.0
    %242 = vmatprep.subr.mxu0 0.0
    %243 = vmatpush1.msra.mxu0 0.0
    %244 = vmatprep.subr.mxu0 0.0
    %245 = vmatpush1.msra.mxu0 0.0
    %246 = vmatprep.subr.mxu0 0.0
    %247 = vmatpush1.msra.mxu0 0.0
    %248 = vmatprep.subr.mxu0 0.0
    %249 = vmatpush1.msra.mxu0 0.0
    %250 = vmatprep.subr.mxu0 0.0
    %251 = vmatpush1.msra.mxu0 0.0
    %252 = vmatprep.subr.mxu0 0.0
    %253 = vmatpush1.msra.mxu0 0.0
    %254 = vmatprep.subr.mxu0 0.0
    %255 = vmatpush1.msra.mxu0 0.0
    %256 = vmatprep.subr.mxu0 0.0
    %257 = vmatpush1.msra.mxu0 0.0
    %258 = vmatprep.subr.mxu0 0.0
    %259 = vmatpush1.msra.mxu0 0.0
    %260 = vmatprep.subr.mxu0 0.0
    %261 = vmatpush1.msra.mxu0 0.0
    %262 = vmatprep.subr.mxu0 0.0
    %263 = vmatpush1.msra.mxu0 0.0
    %264 = vmatprep.subr.mxu0 0.0
    %265 = vmatpush1.msra.mxu0 0.0
    %266 = vmatprep.subr.mxu0 0.0
    %267 = vmatpush1.msra.mxu0 0.0
    %268 = vmatprep.subr.mxu0 0.0
    %269 = vmatpush1.msra.mxu0 0.0
    %270 = vmatprep.subr.mxu0 0.0
    %271 = vmatpush1.msra.mxu0 0.0
    %272 = vmatprep.subr.mxu0 0.0
    %273 = vmatpush1.msra.mxu0 0.0
    %274 = vmatprep.subr.mxu0 0.0
    %275 = vmatpush1.msra.mxu0 0.0
    %276 = vmatprep.subr.mxu0 0.0
    %277 = vmatpush1.msra.mxu0 0.0
    %278 = vmatprep.subr.mxu0 0.0
    %279 = vmatpush1.msra.mxu0 0.0
    %280 = vmatprep.subr.mxu0 0.0
    %281 = vmatpush1.msra.mxu0 0.0
    %282 = vmatprep.subr.mxu0 0.0
    %283 = vmatpush1.msra.mxu0 0.0
    %284 = vmatprep.subr.mxu0 0.0
    %285 = vmatpush1.msra.mxu0 0.0
    %286 = vmatprep.subr.mxu0 0.0
    %287 = vmatpush1.msra.mxu0 0.0
    %288 = vmatprep.subr.mxu0 0.0
    %289 = vmatpush1.msra.mxu0 0.0
    %290 = vmatprep.subr.mxu0 0.0
    %291 = vmatpush1.msra.mxu0 0.0
    %292 = vmatprep.subr.mxu0 0.0
    %293 = vmatpush1.msra.mxu0 0.0
    %294 = vmatprep.mubr.f32.mxu0 0.0
    %295 = vmatmul.mubr.f32.gmra.mrb[0].mxu0 %v228
    %v296 = vpop.f32.mrb[0].mxu0
    %v297 = vadd.f32 %v225, %v296
    %v298 = vpop.f32.mrb[0].mxu0
    %299 = vdwg.mxu0
    %v300 = vld [vmem:[%s1] sm:$0xff]
    %vm301 = vcmp.eq.f32.partialorder %v300, 0.0
    %v302 = vsel %vm301, -1e+10, %v297
    %vm303 = vcmask 130048
    %v304 = vsel %vm303, %v302, -inf
    %305 = vmax.xlane.f32.xlu0 %v304
    %v306 = vpop.xlane.xlu0 %305
    %v307 = vsub.f32 %v302, %v306
    %v308 = vmul.f32 %v307, 1.442695
    %v309 = vpow.pop %v308
    %v310 = vsel %vm303, %v309, 0.0
    %311 = vadd.xlane.f32.xlu0 %v310
    %v312 = vpop.xlane.xlu0 %311
    %v313 = vrcp.pop %v312
    %v314 = vmul.f32 %v309, %v313
    %315 = vst.msk [vmem:[#allocation5] sm:$0xff] %vm303, %v314
    // Predicated region
    $region38: #{tpu_custom_call.1} parent=1 // pred_check
      _
    $region39: #{tpu_custom_call.1} parent=1 // pred_check_branch
      %317 = sbr.rel (0) target = $region41
    $region40: #{tpu_custom_call.1} parent=1 // pred_region
      %s319 = ssub.s32 128, 128
      %320 = vsyncadd [#allocation4], %s319
      %s322 = sshll.u32 [#allocation5], 4
      %s323 = int_to_ptr.vmem [resolvable:$true] %s322
      %325 = dma.vmem_to_hbm [thread:$0]  %s323, 128, %s8, [#allocation4]
    $region41: #{tpu_custom_call.1} parent=1 // pred_fallthru
      _
    // Predicated region
    $region42: #{tpu_custom_call.1} parent=1 // pred_check
      _
    $region43: #{tpu_custom_call.1} parent=1 // pred_check_branch
      %327 = sbr.rel (0) target = $region45
    $region44: #{tpu_custom_call.1} parent=1 // pred_region
      %328 = dma.done [#allocation4], 128
    $region45: #{tpu_custom_call.1} parent=1 // pred_fallthru
      _
    %329 = vsyncpa [#allocation3], 1
    %330 = vsyncpa [#allocation4], 1

</llo_original>
